<compile_context>
chip_gen: v7x
topology: tpu7x:2x2x1
jax: 0.10.0
libtpu: 0.0.40
codegen_flags: <defaults>
</compile_context>

<pallas_src>
import math

import jax
import jax.numpy as jnp
from jax.experimental import pallas as pl
from jax.experimental.pallas import tpu as pltpu


def _rte_kernel(t_ref, x_ref, tbl_ref, o_ref):
    """One grid step over TILE_PK packed rows.

    t_ref   : VMEM int32      (TILE_PK, pack)            slot-shifted indices (tiled)
    x_ref   : VMEM f32        (TILE_PK, pack*H)          packed residual input (tiled)
    tbl_ref : VMEM f32|bf16   (pack*max_len, pack*H)     block-diag folded table (resident)
    o_ref   : VMEM f32        (TILE_PK, pack*H)          packed output (tiled, aliases x)
    """
    tile_pk, pack = t_ref.shape
    k_dim = tbl_ref.shape[0]                      # pack * max_len

    # Packed one-hot: column c of row r is hot iff c == t[r, j] + j*max_len for
    # some slot j.  `pack` broadcast compares + ORs (VPU only, lane-aligned);
    # out-of-range indices were mapped to a >= k_dim sentinel -> select nothing.
    pos = jax.lax.broadcasted_iota(jnp.int32, (tile_pk, k_dim), 1)
    tv = t_ref[...]
    hit = pos == tv[:, 0:1]
    for j in range(1, pack):
        hit = hit | (pos == tv[:, j:j + 1])
    one_hot = hit.astype(tbl_ref.dtype)           # (TILE_PK, pack*max_len)

    # Gather (and the folded Linear+bias) ride the MXU; accumulate in f32.
    gathered = jnp.dot(one_hot, tbl_ref[...],
                       preferred_element_type=jnp.float32)   # (TILE_PK, pack*H)

    # TODO(synk): dropout is identity here (inference semantics); training-mode
    # dropout would use pltpu.prng_seed / pltpu.prng_random_bits on `gathered`.

    # Residual add stays in f32 (cheap VPU tail; correct on v5e too).
    o_ref[...] = (x_ref[...].astype(jnp.float32) + gathered).astype(o_ref.dtype)


def rel_temporal_encoding(x, t, emb_table, w, b, *, tile_rows=1024,
                          compute_dtype=jnp.float32):
    """x: (N, H) f32, t: (N,) int32, emb_table: (max_len, 2H), w: (H, 2H), b: (H,)."""
    n_rows, n_hid = x.shape
    max_len, _ = emb_table.shape

    # ---- One-time parameter prep (outside the hot loop) -------------------
    # Fold Linear + bias into the gather table (f32): out = x + table_f[t].
    table_f = (emb_table.astype(jnp.float32) @ w.T.astype(jnp.float32)
               + b.astype(jnp.float32))                          # (max_len, H)

    # Lane packing factor: present 128-wide rows when H divides 128.
    pack = 128 // n_hid if (n_hid <= 128 and 128 % n_hid == 0) else 1

    # Pad rows so they pack evenly (padded rows use an OOB sentinel index and
    # are sliced off at the end).
    n_pad = (-n_rows) % pack
    if n_pad:
        x = jnp.concatenate([x, jnp.zeros((n_pad, n_hid), x.dtype)], axis=0)
        t = jnp.concatenate([t, jnp.full((n_pad,), -1, t.dtype)], axis=0)
    n_tot = n_rows + n_pad
    n_pk = n_tot // pack

    # Block-diagonal folded table: (pack*max_len, pack*H); ~480 KiB f32 at
    # max_len=240, H=32 -> trivially VMEM-resident on all generations.
    tbl = jnp.kron(jnp.eye(pack, dtype=jnp.float32), table_f).astype(compute_dtype)

    # Slot-shift indices into their diagonal block's row range; invalid indices
    # get a sentinel >= pack*max_len so they select nothing (bounds-safe).
    sentinel = pack * max_len
    t32 = t.astype(jnp.int32)
    t32 = jnp.where((t32 >= 0) & (t32 < max_len), t32, sentinel)
    t_pk = (t32.reshape(n_pk, pack)
            + jnp.arange(pack, dtype=jnp.int32)[None, :] * max_len)   # (n_pk, pack)

    # Free contiguous reshape to a lane-dense (n_pk, pack*H) layout.
    x_pk = x.reshape(n_pk, pack * n_hid)

    # ---- Tile selection ----------------------------------------------------
    # Big tiles amortize per-grid-step overhead; cap so the grid keeps >= 2
    # steps (v7x megacore sharding of the "parallel" axis).  Multiple of 8
    # sublanes, or the full array when tiny.
    if n_pk <= 8:
        tile_pk = n_pk
    else:
        tile_pk = min(max(tile_rows // pack, 8), n_pk)
        tile_pk -= tile_pk % 8
        half = ((pl.cdiv(n_pk, 2) + 7) // 8) * 8
        tile_pk = max(8, min(tile_pk, half))
    grid_n = pl.cdiv(n_pk, tile_pk)

    lane_w = pack * n_hid
    grid_spec = pltpu.PrefetchScalarGridSpec(
        num_scalar_prefetch=0,
        grid=(grid_n,),
        in_specs=[
            pl.BlockSpec((tile_pk, pack), lambda i: (i, 0)),           # t    (tiled)
            pl.BlockSpec((tile_pk, lane_w), lambda i: (i, 0)),         # x    (tiled)
            pl.BlockSpec((pack * max_len, lane_w), lambda i: (0, 0)),  # tbl  (resident)
        ],
        out_specs=pl.BlockSpec((tile_pk, lane_w), lambda i: (i, 0)),
    )

    itemsize_x = jnp.dtype(x.dtype).itemsize
    tbl_bytes = pack * max_len * lane_w * jnp.dtype(compute_dtype).itemsize
    cost = pl.CostEstimate(
        flops=2 * n_pk * (pack * max_len) * lane_w + n_tot * n_hid,
        transcendentals=0,
        bytes_accessed=2 * n_tot * n_hid * itemsize_x + n_tot * 4 + tbl_bytes,
    )

    out_pk = pl.pallas_call(
        _rte_kernel,
        out_shape=jax.ShapeDtypeStruct((n_pk, lane_w), x.dtype),
        grid_spec=grid_spec,
        compiler_params=pltpu.CompilerParams(
            dimension_semantics=("parallel",),   # v7x: shard row tiles across 2 TCs
        ),
        input_output_aliases={1: 0},             # residual add writes in place over x
        cost_estimate=cost,
    )(t_pk, x_pk, tbl)

    out = out_pk.reshape(n_tot, n_hid)
    if n_pad:
        out = out[:n_rows]
    return out


def build_sinusoid_table(n_hid, max_len):
    """Replicates the PyTorch __init__ table construction in float32 exactly,
    including the original operator-precedence quirk in div_term
    (1 / (10000 ** ar / n_hid / 2))."""
    position = jnp.arange(0.0, max_len, dtype=jnp.float32)[:, None]           # (max_len, 1)
    ar = jnp.arange(0.0, n_hid * 2, 2.0, dtype=jnp.float32)                    # (n_hid,)
    div_term = 1.0 / (jnp.power(jnp.float32(10000.0), ar) / n_hid / 2.0)       # (n_hid,)
    angles = position * div_term                                               # (max_len, n_hid)
    table = jnp.zeros((max_len, n_hid * 2), dtype=jnp.float32)
    table = table.at[:, 0::2].set(jnp.sin(angles) / math.sqrt(n_hid))
    table = table.at[:, 1::2].set(jnp.cos(angles) / math.sqrt(n_hid))
    return table


if __name__ == "__main__":
    n_hid = 32
    max_len = 240

    key = jax.random.PRNGKey(0)
    kw, kb, kx, kt, kx2, kt2, kx3, kt3, kx4, kt4 = jax.random.split(key, 10)

    # Deterministic synthetic parameters (not a checkpoint load).
    emb_table = build_sinusoid_table(n_hid, max_len)                           # (240, 64)
    w = jax.random.normal(kw, (n_hid, n_hid * 2), dtype=jnp.float32) * 0.05    # (32, 64)
    b = jax.random.normal(kb, (n_hid,), dtype=jnp.float32) * 0.05              # (32,)

    def reference(xv, tv):
        # Pure-JAX reference (eval-mode dropout = identity).
        return xv + (emb_table[tv] @ w.T + b)

    def check(n, kxi, kti):
        xv = jax.random.normal(kxi, (n, n_hid), dtype=jnp.float32)
        tv = jax.random.randint(kti, (n,), 0, max_len, dtype=jnp.int32)
        out = jax.block_until_ready(rel_temporal_encoding(xv, tv, emb_table, w, b))
        assert out.shape == (n, n_hid)
        assert jnp.allclose(out, reference(xv, tv), atol=1e-4, rtol=1e-4), n

    check(8, kx, kt)      # tiny: single grid step, full-array blocks
    check(10, kx3, kt3)   # exercises the pack-of-4 padding path
    check(512, kx2, kt2)  # two clean 64-packed-row tiles (both v7x TCs busy)
    check(300, kx4, kt4)  # ragged last tile -> masked stores

    print("KERNEL_OK")
</pallas_src>

<mosaic_0001>
module attributes {stable_mosaic.version = 11 : i64} {
  func.func @_rte_kernel(%arg0: i32, %arg1: memref<2x4xi32, #tpu.memory_space<vmem>>, %arg2: memref<2x128xf32, #tpu.memory_space<vmem>>, %arg3: memref<960x128xf32, #tpu.memory_space<vmem>>, %arg4: memref<2x128xf32, #tpu.memory_space<vmem>>) attributes {dimension_semantics = [#tpu.dimension_semantics<parallel>], iteration_bounds = array<i64: 1>, scalar_prefetch = 0 : i64, scratch_operands = 0 : i64, tpu.core_type = #tpu.core_type<tc>, window_params = [{transform_indices = @transform_0, window_bounds = array<i64: 2, 4>}, {transform_indices = @transform_1, window_bounds = array<i64: 2, 128>}, {pipeline_mode = #tpu.pipeline_mode<synchronous>, transform_indices = @transform_2, window_bounds = array<i64: 960, 128>}, {transform_indices = @transform_3, window_bounds = array<i64: 2, 128>}]} {
    %0 = tpu.iota {dimensions = array<i32: 1>} : vector<2x960xi32>
    %c0 = arith.constant 0 : index
    %c0_0 = arith.constant 0 : index
    %1 = vector.load %arg1[%c0, %c0_0] : memref<2x4xi32, #tpu.memory_space<vmem>>, vector<2x4xi32>
    %2 = vector.extract_strided_slice %1 {offsets = [0, 0], sizes = [2, 1], strides = [1, 1]} : vector<2x4xi32> to vector<2x1xi32>
    %3 = vector.broadcast %2 : vector<2x1xi32> to vector<2x960xi32>
    %4 = arith.cmpi eq, %0, %3 : vector<2x960xi32>
    %5 = vector.extract_strided_slice %1 {offsets = [0, 1], sizes = [2, 1], strides = [1, 1]} : vector<2x4xi32> to vector<2x1xi32>
    %6 = vector.broadcast %5 : vector<2x1xi32> to vector<2x960xi32>
    %7 = arith.cmpi eq, %0, %6 : vector<2x960xi32>
    %8 = arith.ori %4, %7 : vector<2x960xi1>
    %9 = vector.extract_strided_slice %1 {offsets = [0, 2], sizes = [2, 1], strides = [1, 1]} : vector<2x4xi32> to vector<2x1xi32>
    %10 = vector.broadcast %9 : vector<2x1xi32> to vector<2x960xi32>
    %11 = arith.cmpi eq, %0, %10 : vector<2x960xi32>
    %12 = arith.ori %8, %11 : vector<2x960xi1>
    %13 = vector.extract_strided_slice %1 {offsets = [0, 3], sizes = [2, 1], strides = [1, 1]} : vector<2x4xi32> to vector<2x1xi32>
    %14 = vector.broadcast %13 : vector<2x1xi32> to vector<2x960xi32>
    %15 = arith.cmpi eq, %0, %14 : vector<2x960xi32>
    %16 = arith.ori %12, %15 : vector<2x960xi1>
    %17 = arith.extui %16 : vector<2x960xi1> to vector<2x960xi32>
    %18 = arith.sitofp %17 : vector<2x960xi32> to vector<2x960xf32>
    %c0_1 = arith.constant 0 : index
    %c0_2 = arith.constant 0 : index
    %19 = vector.load %arg3[%c0_1, %c0_2] : memref<960x128xf32, #tpu.memory_space<vmem>>, vector<960x128xf32>
    %cst = arith.constant dense<0.000000e+00> : vector<2x128xf32>
    %20 = tpu.matmul %18, %19, %cst {dimension_numbers = #tpu.dot_dimension_numbers<[1], [0], [0], [1], [0, 0, 1, 1], [], []>} : vector<2x960xf32>, vector<960x128xf32>, vector<2x128xf32> -> vector<2x128xf32>
    %c0_3 = arith.constant 0 : index
    %c0_4 = arith.constant 0 : index
    %21 = vector.load %arg2[%c0_3, %c0_4] : memref<2x128xf32, #tpu.memory_space<vmem>>, vector<2x128xf32>
    %22 = arith.addf %21, %20 : vector<2x128xf32>
    %c0_5 = arith.constant 0 : index
    %c0_6 = arith.constant 0 : index
    %23 = vector.load %arg4[%c0_5, %c0_6] : memref<2x128xf32, #tpu.memory_space<vmem>>, vector<2x128xf32>
    tpu.vector_store %arg4[%c0_5, %c0_6], %22 {strides = array<i32>} : memref<2x128xf32, #tpu.memory_space<vmem>>, vector<2x128xf32>,
    return
  }
  func.func @transform_0(%arg0: i32) -> (i32, i32) {
    %c0_i32 = arith.constant 0 : i32
    %c0_i32_0 = arith.constant 0 : i32
    return %arg0, %c0_i32 : i32, i32
  }
  func.func @transform_1(%arg0: i32) -> (i32, i32) {
    %c0_i32 = arith.constant 0 : i32
    %c0_i32_0 = arith.constant 0 : i32
    return %arg0, %c0_i32 : i32, i32
  }
  func.func @transform_2(%arg0: i32) -> (i32, i32) {
    %c0_i32 = arith.constant 0 : i32
    %c0_i32_0 = arith.constant 0 : i32
    %c0_i32_1 = arith.constant 0 : i32
    return %c0_i32, %c0_i32_0 : i32, i32
  }
  func.func @transform_3(%arg0: i32) -> (i32, i32) {
    %c0_i32 = arith.constant 0 : i32
    %c0_i32_0 = arith.constant 0 : i32
    return %arg0, %c0_i32 : i32, i32
  }
}

</mosaic_0001>

<llo_original>
// kernel: tpu_custom_call.1
$region0: #{tpu_custom_call.1}
  #allocation0 [shape = 'u32[]', space=smem, size = 0x4, offset = 0x4, fixed_abs, tag = 'smem constant byte address 0x4 - core index']
  #allocation1 [shape = 'u32[144,128]{1,0:T(1,128)}', space=vmem, size = 0x12000, scoped, tag = 'internal scratch']
  %s0 = inlined_call_operand.vmem [shape: s32[2,4], index: 0, kind: input, shape index: {}]
  %s1 = inlined_call_operand.hbm [shape: f32[2,128], index: 1, kind: input, shape index: {}, may-alias: {1,3}]
  %s2 = inlined_call_operand.hbm [shape: f32[960,128], index: 2, kind: input, shape index: {}]
  %s3 = inlined_call_operand.hbm [shape: f32[2,128], index: 3, kind: output, shape index: {}, may-alias: {1,3}]
  %s4 = sld [smem:[#allocation0]]
  $region30: #{tpu_custom_call.1} parent=0
    _
  %s6 = ssub.s32 1, %s4
  %s7 = scalar_select 0, %s6, %s4
  $region1: #{tpu_custom_call.1} parent=0
    #allocation2 [shape = 'u8[1024]{0}', space=vmem, size = 0x400, scoped, tag = 'input window, operand 1, single buffered']
    #allocation3 [shape = 's32[1]{0}', space=sflag, size = 0x4, scoped, tag = 'scoped memory for tpu_custom_call.1']
    #allocation4 [shape = 's32[1]{0}', space=sflag, size = 0x4, scoped, tag = 'scoped memory for tpu_custom_call.1']
    #allocation5 [shape = 'u8[491520]{0}', space=vmem, size = 0x78000, scoped, tag = 'input window, operand 2, single buffered']
    #allocation6 [shape = 's32[1]{0}', space=sflag, size = 0x4, scoped, tag = 'scoped memory for tpu_custom_call.1']
    #allocation7 [shape = 'u8[1024]{0}', space=vmem, size = 0x400, scoped, tag = 'output window, operand 0, single buffered']
    %8 = vsyncpa [#allocation3], 0
    %9 = vsyncpa [#allocation6], 0
    %10 = vsyncpa [#allocation4], 0
    // Predicated region
    $region2: #{tpu_custom_call.1} parent=1 // pred_check
      _
    $region3: #{tpu_custom_call.1} parent=1 // pred_check_branch
      %12 = sbr.rel (0) target = $region5
    $region4: #{tpu_custom_call.1} parent=1 // pred_region
      _
    $region5: #{tpu_custom_call.1} parent=1 // pred_fallthru
      _
    // Predicated region
    $region6: #{tpu_custom_call.1} parent=1 // pred_check
      _
    $region7: #{tpu_custom_call.1} parent=1 // pred_check_branch
      %14 = sbr.rel (0) target = $region9
    $region8: #{tpu_custom_call.1} parent=1 // pred_region
      %s16 = ssub.s32 32, 32
      %17 = vsyncadd [#allocation3], %s16
      %s19 = sshll.u32 [#allocation2], 4
      %s20 = int_to_ptr.vmem [resolvable:$true] %s19
      %22 = dma.hbm_to_vmem [thread:$0]  %s1, 32, %s20, [#allocation3]
    $region9: #{tpu_custom_call.1} parent=1 // pred_fallthru
      _
    // Predicated region
    $region10: #{tpu_custom_call.1} parent=1 // pred_check
      _
    $region11: #{tpu_custom_call.1} parent=1 // pred_check_branch
      %24 = sbr.rel (0) target = $region13
    $region12: #{tpu_custom_call.1} parent=1 // pred_region
      %s26 = ssub.s32 15360, 15360
      %27 = vsyncadd [#allocation6], %s26
      %s28 = sshll.u32 [#allocation5], 4
      %s29 = int_to_ptr.vmem [resolvable:$true] %s28
      %34 = dma.hbm_to_vmem [thread:$0]  %s2, 15360, %s29, [#allocation6], 128, 128, 8
    $region13: #{tpu_custom_call.1} parent=1 // pred_fallthru
      _
    // Predicated region
    $region14: #{tpu_custom_call.1} parent=1 // pred_check
      _
    $region15: #{tpu_custom_call.1} parent=1 // pred_check_branch
      %36 = sbr.rel (0) target = $region17
    $region16: #{tpu_custom_call.1} parent=1 // pred_region
      %37 = dma.done [#allocation3], 32
    $region17: #{tpu_custom_call.1} parent=1 // pred_fallthru
      _
    // Predicated region
    $region18: #{tpu_custom_call.1} parent=1 // pred_check
      _
    $region19: #{tpu_custom_call.1} parent=1 // pred_check_branch
      %39 = sbr.rel (0) target = $region21
    $region20: #{tpu_custom_call.1} parent=1 // pred_region
      %40 = dma.done [#allocation6], 15360
    $region21: #{tpu_custom_call.1} parent=1 // pred_fallthru
      _
    %v41 = vlaneseq
    %v42 = vand.u32 %v41, 127
    %v43 = vadd.s32 %v42, 128
    %v44 = vadd.s32 %v42, 256
    %v45 = vadd.s32 %v42, 384
    %v46 = vadd.s32 %v42, 512
    %v47 = vadd.s32 %v42, 640
    %v48 = vadd.s32 %v42, 768
    %v49 = vadd.s32 %v42, 896
    %v50 = vld [vmem:[%s0] sm:$0x3]
    %51 = vset.pattern.permute.xlu0 0
    %52 = vperm.xlu0 %51, %v50
    %v53 = vpop.permute.xlu0 %52
    %vm54 = vcmp.eq.s32.totalorder %v42, %v53
    %vm55 = vcmp.eq.s32.totalorder %v43, %v53
    %vm56 = vcmp.eq.s32.totalorder %v44, %v53
    %vm57 = vcmp.eq.s32.totalorder %v45, %v53
    %vm58 = vcmp.eq.s32.totalorder %v46, %v53
    %vm59 = vcmp.eq.s32.totalorder %v47, %v53
    %vm60 = vcmp.eq.s32.totalorder %v48, %v53
    %vm61 = vcmp.eq.s32.totalorder %v49, %v53
    %62 = vset.pattern.permute.xlu0 1
    %63 = vperm.xlu0 %62, %v50
    %v64 = vpop.permute.xlu0 %63
    %vm65 = vcmp.eq.s32.totalorder %v42, %v64
    %vm66 = vcmp.eq.s32.totalorder %v43, %v64
    %vm67 = vcmp.eq.s32.totalorder %v44, %v64
    %vm68 = vcmp.eq.s32.totalorder %v45, %v64
    %vm69 = vcmp.eq.s32.totalorder %v46, %v64
    %vm70 = vcmp.eq.s32.totalorder %v47, %v64
    %vm71 = vcmp.eq.s32.totalorder %v48, %v64
    %vm72 = vcmp.eq.s32.totalorder %v49, %v64
    %vm73 = vmor %vm54, %vm65
    %vm74 = vmor %vm55, %vm66
    %vm75 = vmor %vm56, %vm67
    %vm76 = vmor %vm57, %vm68
    %vm77 = vmor %vm58, %vm69
    %vm78 = vmor %vm59, %vm70
    %vm79 = vmor %vm60, %vm71
    %vm80 = vmor %vm61, %vm72
    %81 = vset.pattern.permute.xlu0 2
    %82 = vperm.xlu0 %81, %v50
    %v83 = vpop.permute.xlu0 %82
    %vm84 = vcmp.eq.s32.totalorder %v42, %v83
    %vm85 = vcmp.eq.s32.totalorder %v43, %v83
    %vm86 = vcmp.eq.s32.totalorder %v44, %v83
    %vm87 = vcmp.eq.s32.totalorder %v45, %v83
    %vm88 = vcmp.eq.s32.totalorder %v46, %v83
    %vm89 = vcmp.eq.s32.totalorder %v47, %v83
    %vm90 = vcmp.eq.s32.totalorder %v48, %v83
    %vm91 = vcmp.eq.s32.totalorder %v49, %v83
    %vm92 = vmor %vm73, %vm84
    %vm93 = vmor %vm74, %vm85
    %vm94 = vmor %vm75, %vm86
    %vm95 = vmor %vm76, %vm87
    %vm96 = vmor %vm77, %vm88
    %vm97 = vmor %vm78, %vm89
    %vm98 = vmor %vm79, %vm90
    %vm99 = vmor %vm80, %vm91
    %100 = vset.pattern.permute.xlu0 3
    %101 = vperm.xlu0 %100, %v50
    %v102 = vpop.permute.xlu0 %101
    %vm103 = vcmp.eq.s32.totalorder %v42, %v102
    %vm104 = vcmp.eq.s32.totalorder %v43, %v102
    %vm105 = vcmp.eq.s32.totalorder %v44, %v102
    %vm106 = vcmp.eq.s32.totalorder %v45, %v102
    %vm107 = vcmp.eq.s32.totalorder %v46, %v102
    %vm108 = vcmp.eq.s32.totalorder %v47, %v102
    %vm109 = vcmp.eq.s32.totalorder %v48, %v102
    %vm110 = vcmp.eq.s32.totalorder %v49, %v102
    %vm111 = vmor %vm92, %vm103
    %vm112 = vmor %vm93, %vm104
    %vm113 = vmor %vm94, %vm105
    %vm114 = vmor %vm95, %vm106
    %vm115 = vmor %vm96, %vm107
    %vm116 = vmor %vm97, %vm108
    %vm117 = vmor %vm98, %vm109
    %vm118 = vmor %vm99, %vm110
    %v119 = vsel %vm111, 1, 0
    %v120 = vsel %vm112, 1, 0
    %v121 = vsel %vm113, 1, 0
    %v122 = vsel %vm114, 1, 0
    %v123 = vsel %vm115, 1, 0
    %v124 = vsel %vm116, 1, 0
    %v125 = vsel %vm117, 1, 0
    %v126 = vsel %vm118, 1, 0
    %v127 = vcvt.s32.f32 %v119
    %v128 = vcvt.s32.f32 %v120
    %v129 = vcvt.s32.f32 %v121
    %v130 = vcvt.s32.f32 %v122
    %v131 = vcvt.s32.f32 %v123
    %v132 = vcvt.s32.f32 %v124
    %v133 = vcvt.s32.f32 %v125
    %v134 = vcvt.s32.f32 %v126
    %v135 = vld [vmem:[#allocation5] sm:$0xff]
    %v136 = vld [vmem:[#allocation5 + $0x8] sm:$0xff]
    %v137 = vld [vmem:[#allocation5 + $0x10] sm:$0xff]
    %v138 = vld [vmem:[#allocation5 + $0x18] sm:$0xff]
    %v139 = vld [vmem:[#allocation5 + $0x20] sm:$0xff]
    %v140 = vld [vmem:[#allocation5 + $0x28] sm:$0xff]
    %v141 = vld [vmem:[#allocation5 + $0x30] sm:$0xff]
    %v142 = vld [vmem:[#allocation5 + $0x38] sm:$0xff]
    %v143 = vld [vmem:[#allocation5 + $0x40] sm:$0xff]
    %v144 = vld [vmem:[#allocation5 + $0x48] sm:$0xff]
    %v145 = vld [vmem:[#allocation5 + $0x50] sm:$0xff]
    %v146 = vld [vmem:[#allocation5 + $0x58] sm:$0xff]
    %v147 = vld [vmem:[#allocation5 + $0x60] sm:$0xff]
    %v148 = vld [vmem:[#allocation5 + $0x68] sm:$0xff]
    %v149 = vld [vmem:[#allocation5 + $0x70] sm:$0xff]
    %v150 = vld [vmem:[#allocation5 + $0x78] sm:$0xff]
    %v151 = vld [vmem:[#allocation5 + $0x80] sm:$0xff]
    %v152 = vld [vmem:[#allocation5 + $0x88] sm:$0xff]
    %v153 = vld [vmem:[#allocation5 + $0x90] sm:$0xff]
    %v154 = vld [vmem:[#allocation5 + $0x98] sm:$0xff]
    %v155 = vld [vmem:[#allocation5 + $0xa0] sm:$0xff]
    %v156 = vld [vmem:[#allocation5 + $0xa8] sm:$0xff]
    %v157 = vld [vmem:[#allocation5 + $0xb0] sm:$0xff]
    %v158 = vld [vmem:[#allocation5 + $0xb8] sm:$0xff]
    %v159 = vld [vmem:[#allocation5 + $0xc0] sm:$0xff]
    %v160 = vld [vmem:[#allocation5 + $0xc8] sm:$0xff]
    %v161 = vld [vmem:[#allocation5 + $0xd0] sm:$0xff]
    %v162 = vld [vmem:[#allocation5 + $0xd8] sm:$0xff]
    %v163 = vld [vmem:[#allocation5 + $0xe0] sm:$0xff]
    %v164 = vld [vmem:[#allocation5 + $0xe8] sm:$0xff]
    %v165 = vld [vmem:[#allocation5 + $0xf0] sm:$0xff]
    %v166 = vld [vmem:[#allocation5 + $0xf8] sm:$0xff]
    %v167 = vld [vmem:[#allocation5 + $0x100] sm:$0xff]
    %v168 = vld [vmem:[#allocation5 + $0x108] sm:$0xff]
    %v169 = vld [vmem:[#allocation5 + $0x110] sm:$0xff]
    %v170 = vld [vmem:[#allocation5 + $0x118] sm:$0xff]
    %v171 = vld [vmem:[#allocation5 + $0x120] sm:$0xff]
    %v172 = vld [vmem:[#allocation5 + $0x128] sm:$0xff]
    %v173 = vld [vmem:[#allocation5 + $0x130] sm:$0xff]
    %v174 = vld [vmem:[#allocation5 + $0x138] sm:$0xff]
    %v175 = vld [vmem:[#allocation5 + $0x140] sm:$0xff]
    %v176 = vld [vmem:[#allocation5 + $0x148] sm:$0xff]
    %v177 = vld [vmem:[#allocation5 + $0x150] sm:$0xff]
    %v178 = vld [vmem:[#allocation5 + $0x158] sm:$0xff]
    %v179 = vld [vmem:[#allocation5 + $0x160] sm:$0xff]
    %v180 = vld [vmem:[#allocation5 + $0x168] sm:$0xff]
    %v181 = vld [vmem:[#allocation5 + $0x170] sm:$0xff]
    %v182 = vld [vmem:[#allocation5 + $0x178] sm:$0xff]
    %v183 = vld [vmem:[#allocation5 + $0x180] sm:$0xff]
    %v184 = vld [vmem:[#allocation5 + $0x188] sm:$0xff]
    %v185 = vld [vmem:[#allocation5 + $0x190] sm:$0xff]
    %v186 = vld [vmem:[#allocation5 + $0x198] sm:$0xff]
    %v187 = vld [vmem:[#allocation5 + $0x1a0] sm:$0xff]
    %v188 = vld [vmem:[#allocation5 + $0x1a8] sm:$0xff]
    %v189 = vld [vmem:[#allocation5 + $0x1b0] sm:$0xff]
    %v190 = vld [vmem:[#allocation5 + $0x1b8] sm:$0xff]
    %v191 = vld [vmem:[#allocation5 + $0x1c0] sm:$0xff]
    %v192 = vld [vmem:[#allocation5 + $0x1c8] sm:$0xff]
    %v193 = vld [vmem:[#allocation5 + $0x1d0] sm:$0xff]
    %v194 = vld [vmem:[#allocation5 + $0x1d8] sm:$0xff]
    %v195 = vld [vmem:[#allocation5 + $0x1e0] sm:$0xff]
    %v196 = vld [vmem:[#allocation5 + $0x1e8] sm:$0xff]
    %v197 = vld [vmem:[#allocation5 + $0x1f0] sm:$0xff]
    %v198 = vld [vmem:[#allocation5 + $0x1f8] sm:$0xff]
    %v199 = vld [vmem:[#allocation5 + $0x200] sm:$0xff]
    %v200 = vld [vmem:[#allocation5 + $0x208] sm:$0xff]
    %v201 = vld [vmem:[#allocation5 + $0x210] sm:$0xff]
    %v202 = vld [vmem:[#allocation5 + $0x218] sm:$0xff]
    %v203 = vld [vmem:[#allocation5 + $0x220] sm:$0xff]
    %v204 = vld [vmem:[#allocation5 + $0x228] sm:$0xff]
    %v205 = vld [vmem:[#allocation5 + $0x230] sm:$0xff]
    %v206 = vld [vmem:[#allocation5 + $0x238] sm:$0xff]
    %v207 = vld [vmem:[#allocation5 + $0x240] sm:$0xff]
    %v208 = vld [vmem:[#allocation5 + $0x248] sm:$0xff]
    %v209 = vld [vmem:[#allocation5 + $0x250] sm:$0xff]
    %v210 = vld [vmem:[#allocation5 + $0x258] sm:$0xff]
    %v211 = vld [vmem:[#allocation5 + $0x260] sm:$0xff]
    %v212 = vld [vmem:[#allocation5 + $0x268] sm:$0xff]
    %v213 = vld [vmem:[#allocation5 + $0x270] sm:$0xff]
    %v214 = vld [vmem:[#allocation5 + $0x278] sm:$0xff]
    %v215 = vld [vmem:[#allocation5 + $0x280] sm:$0xff]
    %v216 = vld [vmem:[#allocation5 + $0x288] sm:$0xff]
    %v217 = vld [vmem:[#allocation5 + $0x290] sm:$0xff]
    %v218 = vld [vmem:[#allocation5 + $0x298] sm:$0xff]
    %v219 = vld [vmem:[#allocation5 + $0x2a0] sm:$0xff]
    %v220 = vld [vmem:[#allocation5 + $0x2a8] sm:$0xff]
    %v221 = vld [vmem:[#allocation5 + $0x2b0] sm:$0xff]
    %v222 = vld [vmem:[#allocation5 + $0x2b8] sm:$0xff]
    %v223 = vld [vmem:[#allocation5 + $0x2c0] sm:$0xff]
    %v224 = vld [vmem:[#allocation5 + $0x2c8] sm:$0xff]
    %v225 = vld [vmem:[#allocation5 + $0x2d0] sm:$0xff]
    %v226 = vld [vmem:[#allocation5 + $0x2d8] sm:$0xff]
    %v227 = vld [vmem:[#allocation5 + $0x2e0] sm:$0xff]
    %v228 = vld [vmem:[#allocation5 + $0x2e8] sm:$0xff]
    %v229 = vld [vmem:[#allocation5 + $0x2f0] sm:$0xff]
    %v230 = vld [vmem:[#allocation5 + $0x2f8] sm:$0xff]
    %v231 = vld [vmem:[#allocation5 + $0x300] sm:$0xff]
    %v232 = vld [vmem:[#allocation5 + $0x308] sm:$0xff]
    %v233 = vld [vmem:[#allocation5 + $0x310] sm:$0xff]
    %v234 = vld [vmem:[#allocation5 + $0x318] sm:$0xff]
    %v235 = vld [vmem:[#allocation5 + $0x320] sm:$0xff]
    %v236 = vld [vmem:[#allocation5 + $0x328] sm:$0xff]
    %v237 = vld [vmem:[#allocation5 + $0x330] sm:$0xff]
    %v238 = vld [vmem:[#allocation5 + $0x338] sm:$0xff]
    %v239 = vld [vmem:[#allocation5 + $0x340] sm:$0xff]
    %v240 = vld [vmem:[#allocation5 + $0x348] sm:$0xff]
    %v241 = vld [vmem:[#allocation5 + $0x350] sm:$0xff]
    %v242 = vld [vmem:[#allocation5 + $0x358] sm:$0xff]
    %v243 = vld [vmem:[#allocation5 + $0x360] sm:$0xff]
    %v244 = vld [vmem:[#allocation5 + $0x368] sm:$0xff]
    %v245 = vld [vmem:[#allocation5 + $0x370] sm:$0xff]
    %v246 = vld [vmem:[#allocation5 + $0x378] sm:$0xff]
    %v247 = vld [vmem:[#allocation5 + $0x380] sm:$0xff]
    %v248 = vld [vmem:[#allocation5 + $0x388] sm:$0xff]
    %v249 = vld [vmem:[#allocation5 + $0x390] sm:$0xff]
    %v250 = vld [vmem:[#allocation5 + $0x398] sm:$0xff]
    %v251 = vld [vmem:[#allocation5 + $0x3a0] sm:$0xff]
    %v252 = vld [vmem:[#allocation5 + $0x3a8] sm:$0xff]
    %v253 = vld [vmem:[#allocation5 + $0x3b0] sm:$0xff]
    %v254 = vld [vmem:[#allocation5 + $0x3b8] sm:$0xff]
    %vm255 = vcmask 523264
    %v257 = vsel %vm255, %v134, 0
    %259 = vmatprep.subr.mxu0 0.0
    %260 = vmatpush1.msra.mxu0 %v135
    %261 = vmatprep.subr.mxu0 0.0
    %262 = vmatpush1.msra.mxu0 %v136
    %263 = vmatprep.subr.mxu0 0.0
    %264 = vmatpush1.msra.mxu0 %v137
    %265 = vmatprep.subr.mxu0 0.0
    %266 = vmatpush1.msra.mxu0 %v138
    %267 = vmatprep.subr.mxu0 0.0
    %268 = vmatpush1.msra.mxu0 %v139
    %269 = vmatprep.subr.mxu0 0.0
    %270 = vmatpush1.msra.mxu0 %v140
    %271 = vmatprep.subr.mxu0 0.0
    %272 = vmatpush1.msra.mxu0 %v141
    %273 = vmatprep.subr.mxu0 0.0
    %274 = vmatpush1.msra.mxu0 %v142
    %275 = vmatprep.subr.mxu0 0.0
    %276 = vmatpush1.msra.mxu0 %v143
    %277 = vmatprep.subr.mxu0 0.0
    %278 = vmatpush1.msra.mxu0 %v144
    %279 = vmatprep.subr.mxu0 0.0
    %280 = vmatpush1.msra.mxu0 %v145
    %281 = vmatprep.subr.mxu0 0.0
    %282 = vmatpush1.msra.mxu0 %v146
    %283 = vmatprep.subr.mxu0 0.0
    %284 = vmatpush1.msra.mxu0 %v147
    %285 = vmatprep.subr.mxu0 0.0
    %286 = vmatpush1.msra.mxu0 %v148
    %287 = vmatprep.subr.mxu0 0.0
    %288 = vmatpush1.msra.mxu0 %v149
    %289 = vmatprep.subr.mxu0 0.0
    %290 = vmatpush1.msra.mxu0 %v150
    %291 = vmatprep.subr.mxu0 0.0
    %292 = vmatpush1.msra.mxu0 %v151
    %293 = vmatprep.subr.mxu0 0.0
    %294 = vmatpush1.msra.mxu0 %v152
    %295 = vmatprep.subr.mxu0 0.0
    %296 = vmatpush1.msra.mxu0 %v153
    %297 = vmatprep.subr.mxu0 0.0
    %298 = vmatpush1.msra.mxu0 %v154
    %299 = vmatprep.subr.mxu0 0.0
    %300 = vmatpush1.msra.mxu0 %v155
    %301 = vmatprep.subr.mxu0 0.0
    %302 = vmatpush1.msra.mxu0 %v156
    %303 = vmatprep.subr.mxu0 0.0
    %304 = vmatpush1.msra.mxu0 %v157
    %305 = vmatprep.subr.mxu0 0.0
    %306 = vmatpush1.msra.mxu0 %v158
    %307 = vmatprep.subr.mxu0 0.0
    %308 = vmatpush1.msra.mxu0 %v159
    %309 = vmatprep.subr.mxu0 0.0
    %310 = vmatpush1.msra.mxu0 %v160
    %311 = vmatprep.subr.mxu0 0.0
    %312 = vmatpush1.msra.mxu0 %v161
    %313 = vmatprep.subr.mxu0 0.0
    %314 = vmatpush1.msra.mxu0 %v162
    %315 = vmatprep.subr.mxu0 0.0
    %316 = vmatpush1.msra.mxu0 %v163
    %317 = vmatprep.subr.mxu0 0.0
    %318 = vmatpush1.msra.mxu0 %v164
    %319 = vmatprep.subr.mxu0 0.0
    %320 = vmatpush1.msra.mxu0 %v165
    %321 = vmatprep.subr.mxu0 0.0
    %322 = vmatpush1.msra.mxu0 %v166
    %323 = vmatprep.mubr.f32.mxu0 %v128
    %324 = vmatmul.mubr.f32.gmra.mrb[0].mxu0 %v127
    %v325 = vpop.f32.mrb[0].mxu0
    %v326 = vadd.f32 0.0, %v325
    %v327 = vpop.f32.mrb[0].mxu0
    %328 = vdwg.mxu0
    %329 = vmatprep.subr.mxu0 0.0
    %330 = vmatpush1.msra.mxu0 %v167
    %331 = vmatprep.subr.mxu0 0.0
    %332 = vmatpush1.msra.mxu0 %v168
    %333 = vmatprep.subr.mxu0 0.0
    %334 = vmatpush1.msra.mxu0 %v169
    %335 = vmatprep.subr.mxu0 0.0
    %336 = vmatpush1.msra.mxu0 %v170
    %337 = vmatprep.subr.mxu0 0.0
    %338 = vmatpush1.msra.mxu0 %v171
    %339 = vmatprep.subr.mxu0 0.0
    %340 = vmatpush1.msra.mxu0 %v172
    %341 = vmatprep.subr.mxu0 0.0
    %342 = vmatpush1.msra.mxu0 %v173
    %343 = vmatprep.subr.mxu0 0.0
    %344 = vmatpush1.msra.mxu0 %v174
    %345 = vmatprep.subr.mxu0 0.0
    %346 = vmatpush1.msra.mxu0 %v175
    %347 = vmatprep.subr.mxu0 0.0
    %348 = vmatpush1.msra.mxu0 %v176
    %349 = vmatprep.subr.mxu0 0.0
    %350 = vmatpush1.msra.mxu0 %v177
    %351 = vmatprep.subr.mxu0 0.0
    %352 = vmatpush1.msra.mxu0 %v178
    %353 = vmatprep.subr.mxu0 0.0
    %354 = vmatpush1.msra.mxu0 %v179
    %355 = vmatprep.subr.mxu0 0.0
    %356 = vmatpush1.msra.mxu0 %v180
    %357 = vmatprep.subr.mxu0 0.0
    %358 = vmatpush1.msra.mxu0 %v181
    %359 = vmatprep.subr.mxu0 0.0
    %360 = vmatpush1.msra.mxu0 %v182
    %361 = vmatprep.subr.mxu0 0.0
    %362 = vmatpush1.msra.mxu0 %v183
    %363 = vmatprep.subr.mxu0 0.0
    %364 = vmatpush1.msra.mxu0 %v184
    %365 = vmatprep.subr.mxu0 0.0
    %366 = vmatpush1.msra.mxu0 %v185
    %367 = vmatprep.subr.mxu0 0.0
    %368 = vmatpush1.msra.mxu0 %v186
    %369 = vmatprep.subr.mxu0 0.0
    %370 = vmatpush1.msra.mxu0 %v187
    %371 = vmatprep.subr.mxu0 0.0
    %372 = vmatpush1.msra.mxu0 %v188
    %373 = vmatprep.subr.mxu0 0.0
    %374 = vmatpush1.msra.mxu0 %v189
    %375 = vmatprep.subr.mxu0 0.0
    %376 = vmatpush1.msra.mxu0 %v190
    %377 = vmatprep.subr.mxu0 0.0
    %378 = vmatpush1.msra.mxu0 %v191
    %379 = vmatprep.subr.mxu0 0.0
    %380 = vmatpush1.msra.mxu0 %v192
    %381 = vmatprep.subr.mxu0 0.0
    %382 = vmatpush1.msra.mxu0 %v193
    %383 = vmatprep.subr.mxu0 0.0
    %384 = vmatpush1.msra.mxu0 %v194
    %385 = vmatprep.subr.mxu0 0.0
    %386 = vmatpush1.msra.mxu0 %v195
    %387 = vmatprep.subr.mxu0 0.0
    %388 = vmatpush1.msra.mxu0 %v196
    %389 = vmatprep.subr.mxu0 0.0
    %390 = vmatpush1.msra.mxu0 %v197
    %391 = vmatprep.subr.mxu0 0.0
    %392 = vmatpush1.msra.mxu0 %v198
    %393 = vmatprep.mubr.f32.mxu0 %v130
    %394 = vmatmul.mubr.f32.gmra.mrb[0].mxu0 %v129
    %v395 = vpop.f32.mrb[0].mxu0
    %v396 = vadd.f32 %v326, %v395
    %v397 = vpop.f32.mrb[0].mxu0
    %398 = vdwg.mxu0
    %399 = vmatprep.subr.mxu0 0.0
    %400 = vmatpush1.msra.mxu0 %v199
    %401 = vmatprep.subr.mxu0 0.0
    %402 = vmatpush1.msra.mxu0 %v200
    %403 = vmatprep.subr.mxu0 0.0
    %404 = vmatpush1.msra.mxu0 %v201
    %405 = vmatprep.subr.mxu0 0.0
    %406 = vmatpush1.msra.mxu0 %v202
    %407 = vmatprep.subr.mxu0 0.0
    %408 = vmatpush1.msra.mxu0 %v203
    %409 = vmatprep.subr.mxu0 0.0
    %410 = vmatpush1.msra.mxu0 %v204
    %411 = vmatprep.subr.mxu0 0.0
    %412 = vmatpush1.msra.mxu0 %v205
    %413 = vmatprep.subr.mxu0 0.0
    %414 = vmatpush1.msra.mxu0 %v206
    %415 = vmatprep.subr.mxu0 0.0
    %416 = vmatpush1.msra.mxu0 %v207
    %417 = vmatprep.subr.mxu0 0.0
    %418 = vmatpush1.msra.mxu0 %v208
    %419 = vmatprep.subr.mxu0 0.0
    %420 = vmatpush1.msra.mxu0 %v209
    %421 = vmatprep.subr.mxu0 0.0
    %422 = vmatpush1.msra.mxu0 %v210
    %423 = vmatprep.subr.mxu0 0.0
    %424 = vmatpush1.msra.mxu0 %v211
    %425 = vmatprep.subr.mxu0 0.0
    %426 = vmatpush1.msra.mxu0 %v212
    %427 = vmatprep.subr.mxu0 0.0
    %428 = vmatpush1.msra.mxu0 %v213
    %429 = vmatprep.subr.mxu0 0.0
    %430 = vmatpush1.msra.mxu0 %v214
    %431 = vmatprep.subr.mxu0 0.0
    %432 = vmatpush1.msra.mxu0 %v215
    %433 = vmatprep.subr.mxu0 0.0
    %434 = vmatpush1.msra.mxu0 %v216
    %435 = vmatprep.subr.mxu0 0.0
    %436 = vmatpush1.msra.mxu0 %v217
    %437 = vmatprep.subr.mxu0 0.0
    %438 = vmatpush1.msra.mxu0 %v218
    %439 = vmatprep.subr.mxu0 0.0
    %440 = vmatpush1.msra.mxu0 %v219
    %441 = vmatprep.subr.mxu0 0.0
    %442 = vmatpush1.msra.mxu0 %v220
    %443 = vmatprep.subr.mxu0 0.0
    %444 = vmatpush1.msra.mxu0 %v221
    %445 = vmatprep.subr.mxu0 0.0
    %446 = vmatpush1.msra.mxu0 %v222
    %447 = vmatprep.subr.mxu0 0.0
    %448 = vmatpush1.msra.mxu0 %v223
    %449 = vmatprep.subr.mxu0 0.0
    %450 = vmatpush1.msra.mxu0 %v224
    %451 = vmatprep.subr.mxu0 0.0
    %452 = vmatpush1.msra.mxu0 %v225
    %453 = vmatprep.subr.mxu0 0.0
    %454 = vmatpush1.msra.mxu0 %v226
    %455 = vmatprep.subr.mxu0 0.0
    %456 = vmatpush1.msra.mxu0 %v227
    %457 = vmatprep.subr.mxu0 0.0
    %458 = vmatpush1.msra.mxu0 %v228
    %459 = vmatprep.subr.mxu0 0.0
    %460 = vmatpush1.msra.mxu0 %v229
    %461 = vmatprep.subr.mxu0 0.0
    %462 = vmatpush1.msra.mxu0 %v230
    %463 = vmatprep.mubr.f32.mxu0 %v132
    %464 = vmatmul.mubr.f32.gmra.mrb[0].mxu0 %v131
    %v465 = vpop.f32.mrb[0].mxu0
    %v466 = vadd.f32 %v396, %v465
    %v467 = vpop.f32.mrb[0].mxu0
    %468 = vdwg.mxu0
    %469 = vmatprep.subr.mxu0 0.0
    %470 = vmatpush1.msra.mxu0 %v231
    %471 = vmatprep.subr.mxu0 0.0
    %472 = vmatpush1.msra.mxu0 %v232
    %473 = vmatprep.subr.mxu0 0.0
    %474 = vmatpush1.msra.mxu0 %v233
    %475 = vmatprep.subr.mxu0 0.0
    %476 = vmatpush1.msra.mxu0 %v234
    %477 = vmatprep.subr.mxu0 0.0
    %478 = vmatpush1.msra.mxu0 %v235
    %479 = vmatprep.subr.mxu0 0.0
    %480 = vmatpush1.msra.mxu0 %v236
    %481 = vmatprep.subr.mxu0 0.0
    %482 = vmatpush1.msra.mxu0 %v237
    %483 = vmatprep.subr.mxu0 0.0
    %484 = vmatpush1.msra.mxu0 %v238
    %485 = vmatprep.subr.mxu0 0.0
    %486 = vmatpush1.msra.mxu0 %v239
    %487 = vmatprep.subr.mxu0 0.0
    %488 = vmatpush1.msra.mxu0 %v240
    %489 = vmatprep.subr.mxu0 0.0
    %490 = vmatpush1.msra.mxu0 %v241
    %491 = vmatprep.subr.mxu0 0.0
    %492 = vmatpush1.msra.mxu0 %v242
    %493 = vmatprep.subr.mxu0 0.0
    %494 = vmatpush1.msra.mxu0 %v243
    %495 = vmatprep.subr.mxu0 0.0
    %496 = vmatpush1.msra.mxu0 %v244
    %497 = vmatprep.subr.mxu0 0.0
    %498 = vmatpush1.msra.mxu0 %v245
    %499 = vmatprep.subr.mxu0 0.0
    %500 = vmatpush1.msra.mxu0 %v246
    %501 = vmatprep.subr.mxu0 0.0
    %502 = vmatpush1.msra.mxu0 %v247
    %503 = vmatprep.subr.mxu0 0.0
    %504 = vmatpush1.msra.mxu0 %v248
    %505 = vmatprep.subr.mxu0 0.0
    %506 = vmatpush1.msra.mxu0 %v249
    %507 = vmatprep.subr.mxu0 0.0
    %508 = vmatpush1.msra.mxu0 %v250
    %509 = vmatprep.subr.mxu0 0.0
    %510 = vmatpush1.msra.mxu0 %v251
    %511 = vmatprep.subr.mxu0 0.0
    %512 = vmatpush1.msra.mxu0 %v252
    %513 = vmatprep.subr.mxu0 0.0
    %514 = vmatpush1.msra.mxu0 %v253
    %515 = vmatprep.subr.mxu0 0.0
    %516 = vmatpush1.msra.mxu0 %v254
    %517 = vmatprep.subr.mxu0 0.0
    %518 = vmatpush1.msra.mxu0 0.0
    %519 = vmatprep.subr.mxu0 0.0
    %520 = vmatpush1.msra.mxu0 0.0
    %521 = vmatprep.subr.mxu0 0.0
    %522 = vmatpush1.msra.mxu0 0.0
    %523 = vmatprep.subr.mxu0 0.0
    %524 = vmatpush1.msra.mxu0 0.0
    %525 = vmatprep.subr.mxu0 0.0
    %526 = vmatpush1.msra.mxu0 0.0
    %527 = vmatprep.subr.mxu0 0.0
    %528 = vmatpush1.msra.mxu0 0.0
    %529 = vmatprep.subr.mxu0 0.0
    %530 = vmatpush1.msra.mxu0 0.0
    %531 = vmatprep.subr.mxu0 0.0
    %532 = vmatpush1.msra.mxu0 0.0
    %533 = vmatprep.mubr.f32.mxu0 %v257
    %534 = vmatmul.mubr.f32.gmra.mrb[0].mxu0 %v133
    %v535 = vpop.f32.mrb[0].mxu0
    %v536 = vadd.f32 %v466, %v535
    %v537 = vpop.f32.mrb[0].mxu0
    %538 = vdwg.mxu0
    %v539 = vld [vmem:[#allocation2] sm:$0x3]
    %v540 = vadd.f32 %v539, %v536
    %541 = vst [vmem:[#allocation7] sm:$0x3] %v540
    // Predicated region
    $region22: #{tpu_custom_call.1} parent=1 // pred_check
      _
    $region23: #{tpu_custom_call.1} parent=1 // pred_check_branch
      %543 = sbr.rel (0) target = $region25
    $region24: #{tpu_custom_call.1} parent=1 // pred_region
      %s545 = ssub.s32 32, 32
      %546 = vsyncadd [#allocation4], %s545
      %s548 = sshll.u32 [#allocation7], 4
      %s549 = int_to_ptr.vmem [resolvable:$true] %s548
      %551 = dma.vmem_to_hbm [thread:$0]  %s549, 32, %s3, [#allocation4]
    $region25: #{tpu_custom_call.1} parent=1 // pred_fallthru
      _
    // Predicated region
    $region26: #{tpu_custom_call.1} parent=1 // pred_check
      _
    $region27: #{tpu_custom_call.1} parent=1 // pred_check_branch
      %553 = sbr.rel (0) target = $region29
    $region28: #{tpu_custom_call.1} parent=1 // pred_region
      %554 = dma.done [#allocation4], 32
    $region29: #{tpu_custom_call.1} parent=1 // pred_fallthru
      _
    %555 = vsyncpa [#allocation3], 1
    %556 = vsyncpa [#allocation6], 1
    %557 = vsyncpa [#allocation4], 1

</llo_original>
